<compile_context>
chip_gen: v7x
topology: tpu7x:2x2x1
jax: 0.10.0
libtpu: 0.0.40
codegen_flags: <defaults>
</compile_context>

<pallas_src>
import functools

import jax
import jax.numpy as jnp
from jax import lax
from jax.experimental import pallas as pl
from jax.experimental.pallas import tpu as pltpu


def _round_up(a, b):
    return (a + b - 1) // b * b


def merge_windows(x, H, W, D):
    """Exact port of the PatchMerging even/odd gather + concat (torch channel order)."""
    B, L, C = x.shape
    xg = x.reshape(B, H, W, D, C)
    x0 = xg[:, 0::2, 0::2, 0::2, :]
    x1 = xg[:, 1::2, 0::2, 0::2, :]
    x2 = xg[:, 0::2, 1::2, 0::2, :]
    x3 = xg[:, 0::2, 0::2, 1::2, :]
    x4 = xg[:, 1::2, 1::2, 0::2, :]
    x5 = xg[:, 0::2, 1::2, 1::2, :]
    x6 = xg[:, 1::2, 0::2, 1::2, :]
    x7 = xg[:, 1::2, 1::2, 1::2, :]
    m = jnp.concatenate([x0, x1, x2, x3, x4, x5, x6, x7], axis=-1)
    return m.reshape(B, (H // 2) * (W // 2) * (D // 2), 8 * C)


def _ln_linear_kernel(x_ref, g_ref, b_ref, w_ref, o_ref, *, eps):
    # x_ref : (TM, 8C)   g_ref/b_ref : (1, 8C)   w_ref : (8C, Co)   o_ref : (TM, Co)
    x = x_ref[...].astype(jnp.float32)
    mean = jnp.mean(x, axis=-1, keepdims=True)
    xc = x - mean
    var = jnp.mean(xc * xc, axis=-1, keepdims=True)       # biased variance (torch LayerNorm)
    inv = lax.rsqrt(var + eps)
    xn = xc * inv * g_ref[...].astype(jnp.float32) + b_ref[...].astype(jnp.float32)
    o_ref[...] = jnp.dot(
        xn, w_ref[...].astype(jnp.float32), preferred_element_type=jnp.float32
    ).astype(o_ref.dtype)


def patch_merging(x, H, W, D, gamma, beta, weight, *, eps=1e-5, tile_rows=256):
    """x: (B, H*W*D, C); gamma/beta: (8C,); weight: (Co, 8C) (PyTorch nn.Linear layout)."""
    B, L, C = x.shape
    assert L == H * W * D, "input feature has wrong size"
    assert H % 2 == 0 and W % 2 == 0 and D % 2 == 0, "H/W/D must be even"
    C8 = 8 * C
    Co = weight.shape[0]
    assert weight.shape == (Co, C8) and gamma.shape == (C8,) and beta.shape == (C8,)

    # Step (1): layout plumbing in the wrapper -> lane-dense (rows, 8C) slab for the kernel.
    merged = merge_windows(x, H, W, D)                     # (B, L8, 8C)
    L8 = merged.shape[1]
    rows = B * L8
    merged2 = merged.reshape(rows, C8)

    tm = min(tile_rows, _round_up(rows, 8))
    rows_p = _round_up(rows, tm)
    if rows_p != rows:
        merged2 = jnp.pad(merged2, ((0, rows_p - rows), (0, 0)))

    kernel = functools.partial(_ln_linear_kernel, eps=eps)
    out = pl.pallas_call(
        kernel,
        out_shape=jax.ShapeDtypeStruct((rows_p, Co), x.dtype),
        grid=(rows_p // tm,),
        in_specs=[
            pl.BlockSpec((tm, C8), lambda i: (i, 0)),      # token tile of merged activations
            pl.BlockSpec((1, C8), lambda i: (0, 0)),       # LayerNorm gamma (resident)
            pl.BlockSpec((1, C8), lambda i: (0, 0)),       # LayerNorm beta  (resident)
            pl.BlockSpec((C8, Co), lambda i: (0, 0)),      # reduction weight (resident)
        ],
        out_specs=pl.BlockSpec((tm, Co), lambda i: (i, 0)),
        compiler_params=pltpu.CompilerParams(dimension_semantics=("parallel",)),
    )(merged2, gamma.reshape(1, C8), beta.reshape(1, C8), jnp.transpose(weight))

    return out[:rows].reshape(B, L8, Co)


def ref_patch_merging(x, H, W, D, gamma, beta, weight, eps=1e-5):
    """Pure-JAX reference of the PatchMerging forward (LayerNorm + bias-free Linear)."""
    m = merge_windows(x, H, W, D).astype(jnp.float32)
    mu = jnp.mean(m, axis=-1, keepdims=True)
    var = jnp.mean((m - mu) ** 2, axis=-1, keepdims=True)
    xn = (m - mu) / jnp.sqrt(var + eps) * gamma + beta
    return jnp.einsum("blk,ok->blo", xn, weight)


if __name__ == "__main__":
    B, C = 2, 32                 # dim = 32  ->  8C = 256 in, 4C = 128 out (lane-dense)
    H = W = D = 8                # even spatial dims; L = 512 tokens
    L = H * W * D

    key = jax.random.PRNGKey(0)
    kx, kg, kb, kw = jax.random.split(key, 4)
    x = jax.random.normal(kx, (B, L, C), dtype=jnp.float32)
    gamma = 1.0 + 0.1 * jax.random.normal(kg, (8 * C,), dtype=jnp.float32)
    beta = 0.1 * jax.random.normal(kb, (8 * C,), dtype=jnp.float32)
    weight = jax.random.normal(kw, (4 * C, 8 * C), dtype=jnp.float32) / jnp.sqrt(8.0 * C)

    out = patch_merging(x, H, W, D, gamma, beta, weight, tile_rows=64)  # 2 grid steps here
    out = jax.block_until_ready(out)

    ref = ref_patch_merging(x, H, W, D, gamma, beta, weight)
    assert out.shape == (B, L // 8, 4 * C)
    assert jnp.allclose(out, ref, atol=1e-4, rtol=1e-4), "mismatch vs reference"

    print("KERNEL_OK")
</pallas_src>

<mosaic_0001>
module attributes {stable_mosaic.version = 11 : i64} {
  func.func @_ln_linear_kernel(%arg0: i32, %arg1: memref<64x256xf32, #tpu.memory_space<vmem>>, %arg2: memref<1x256xf32, #tpu.memory_space<vmem>>, %arg3: memref<1x256xf32, #tpu.memory_space<vmem>>, %arg4: memref<256x128xf32, #tpu.memory_space<vmem>>, %arg5: memref<64x128xf32, #tpu.memory_space<vmem>>) attributes {dimension_semantics = [#tpu.dimension_semantics<parallel>], iteration_bounds = array<i64: 2>, scalar_prefetch = 0 : i64, scratch_operands = 0 : i64, tpu.core_type = #tpu.core_type<tc>, window_params = [{transform_indices = @transform_0, window_bounds = array<i64: 64, 256>}, {pipeline_mode = #tpu.pipeline_mode<synchronous>, transform_indices = @transform_1, window_bounds = array<i64: 1, 256>}, {pipeline_mode = #tpu.pipeline_mode<synchronous>, transform_indices = @transform_2, window_bounds = array<i64: 1, 256>}, {pipeline_mode = #tpu.pipeline_mode<synchronous>, transform_indices = @transform_3, window_bounds = array<i64: 256, 128>}, {transform_indices = @transform_4, window_bounds = array<i64: 64, 128>}]} {
    %c0 = arith.constant 0 : index
    %c0_0 = arith.constant 0 : index
    %0 = vector.load %arg1[%c0, %c0_0] : memref<64x256xf32, #tpu.memory_space<vmem>>, vector<64x256xf32>
    %cst = arith.constant dense<0.000000e+00> : vector<64xf32>
    %1 = vector.multi_reduction <add>, %0, %cst [1] : vector<64x256xf32> to vector<64xf32>
    %2 = vector.shape_cast %1 : vector<64xf32> to vector<64x1xf32>
    %cst_1 = arith.constant 2.560000e+02 : f32
    %3 = vector.broadcast %cst_1 : f32 to vector<64x1xf32>
    %4 = arith.divf %2, %3 : vector<64x1xf32>
    %5 = vector.broadcast %4 : vector<64x1xf32> to vector<64x256xf32>
    %6 = arith.subf %0, %5 : vector<64x256xf32>
    %7 = arith.mulf %6, %6 : vector<64x256xf32>
    %cst_2 = arith.constant dense<0.000000e+00> : vector<64xf32>
    %8 = vector.multi_reduction <add>, %7, %cst_2 [1] : vector<64x256xf32> to vector<64xf32>
    %9 = vector.shape_cast %8 : vector<64xf32> to vector<64x1xf32>
    %cst_3 = arith.constant 2.560000e+02 : f32
    %10 = vector.broadcast %cst_3 : f32 to vector<64x1xf32>
    %11 = arith.divf %9, %10 : vector<64x1xf32>
    %cst_4 = arith.constant 9.99999974E-6 : f32
    %12 = vector.broadcast %cst_4 : f32 to vector<64x1xf32>
    %13 = arith.addf %11, %12 : vector<64x1xf32>
    %14 = math.rsqrt %13 : vector<64x1xf32>
    %15 = vector.broadcast %14 : vector<64x1xf32> to vector<64x256xf32>
    %16 = arith.mulf %6, %15 : vector<64x256xf32>
    %c0_5 = arith.constant 0 : index
    %c0_6 = arith.constant 0 : index
    %17 = vector.load %arg2[%c0_5, %c0_6] : memref<1x256xf32, #tpu.memory_space<vmem>>, vector<1x256xf32>
    %18 = vector.broadcast %17 : vector<1x256xf32> to vector<64x256xf32>
    %19 = arith.mulf %16, %18 : vector<64x256xf32>
    %c0_7 = arith.constant 0 : index
    %c0_8 = arith.constant 0 : index
    %20 = vector.load %arg3[%c0_7, %c0_8] : memref<1x256xf32, #tpu.memory_space<vmem>>, vector<1x256xf32>
    %21 = vector.broadcast %20 : vector<1x256xf32> to vector<64x256xf32>
    %22 = arith.addf %19, %21 : vector<64x256xf32>
    %c0_9 = arith.constant 0 : index
    %c0_10 = arith.constant 0 : index
    %23 = vector.load %arg4[%c0_9, %c0_10] : memref<256x128xf32, #tpu.memory_space<vmem>>, vector<256x128xf32>
    %cst_11 = arith.constant dense<0.000000e+00> : vector<64x128xf32>
    %24 = tpu.matmul %22, %23, %cst_11 {dimension_numbers = #tpu.dot_dimension_numbers<[1], [0], [0], [1], [0, 0, 1, 1], [], []>} : vector<64x256xf32>, vector<256x128xf32>, vector<64x128xf32> -> vector<64x128xf32>
    %c0_12 = arith.constant 0 : index
    %c0_13 = arith.constant 0 : index
    %25 = vector.load %arg5[%c0_12, %c0_13] : memref<64x128xf32, #tpu.memory_space<vmem>>, vector<64x128xf32>
    tpu.vector_store %arg5[%c0_12, %c0_13], %24 {strides = array<i32>} : memref<64x128xf32, #tpu.memory_space<vmem>>, vector<64x128xf32>,
    return
  }
  func.func @transform_0(%arg0: i32) -> (i32, i32) {
    %c0_i32 = arith.constant 0 : i32
    %c0_i32_0 = arith.constant 0 : i32
    return %arg0, %c0_i32 : i32, i32
  }
  func.func @transform_1(%arg0: i32) -> (i32, i32) {
    %c0_i32 = arith.constant 0 : i32
    %c0_i32_0 = arith.constant 0 : i32
    %c0_i32_1 = arith.constant 0 : i32
    return %c0_i32, %c0_i32_0 : i32, i32
  }
  func.func @transform_2(%arg0: i32) -> (i32, i32) {
    %c0_i32 = arith.constant 0 : i32
    %c0_i32_0 = arith.constant 0 : i32
    %c0_i32_1 = arith.constant 0 : i32
    return %c0_i32, %c0_i32_0 : i32, i32
  }
  func.func @transform_3(%arg0: i32) -> (i32, i32) {
    %c0_i32 = arith.constant 0 : i32
    %c0_i32_0 = arith.constant 0 : i32
    %c0_i32_1 = arith.constant 0 : i32
    return %c0_i32, %c0_i32_0 : i32, i32
  }
  func.func @transform_4(%arg0: i32) -> (i32, i32) {
    %c0_i32 = arith.constant 0 : i32
    %c0_i32_0 = arith.constant 0 : i32
    return %arg0, %c0_i32 : i32, i32
  }
}

</mosaic_0001>

<llo_original>
// kernel: tpu_custom_call.1
$region0: #{tpu_custom_call.1}
  #allocation0 [shape = 'u32[]', space=smem, size = 0x4, offset = 0x4, fixed_abs, tag = 'smem constant byte address 0x4 - core index']
  #allocation1 [shape = 'u32[144,128]{1,0:T(1,128)}', space=vmem, size = 0x12000, scoped, tag = 'internal scratch']
  %s0 = inlined_call_operand.hbm [shape: f32[128,256], index: 0, kind: input, shape index: {}]
  %s1 = inlined_call_operand.vmem [shape: f32[1,256], index: 1, kind: input, shape index: {}]
  %s2 = inlined_call_operand.vmem [shape: f32[1,256], index: 2, kind: input, shape index: {}]
  %s3 = inlined_call_operand.hbm [shape: f32[256,128], index: 3, kind: input, shape index: {}]
  %s4 = inlined_call_operand.hbm [shape: f32[128,128], index: 4, kind: output, shape index: {}]
  %s5 = sld [smem:[#allocation0]]
  $region57: #{tpu_custom_call.1} parent=0
    _
  %s7 = ssub.s32 1, %s5
  %s8 = scalar_select 0, %s7, %s5
  $region1: #{tpu_custom_call.1} parent=0
    #allocation2 [shape = 'u8[131072]{0}', space=vmem, size = 0x20000, scoped, tag = 'input window, operand 0']
    #allocation3 [shape = 's32[2]{0}', space=sflag, size = 0x8, scoped, tag = 'scoped memory for tpu_custom_call.1']
    #allocation4 [shape = 's32[2]{0}', space=sflag, size = 0x8, scoped, tag = 'scoped memory for tpu_custom_call.1']
    #allocation5 [shape = 'u8[131072]{0}', space=vmem, size = 0x20000, scoped, tag = 'input window, operand 3, single buffered']
    #allocation6 [shape = 's32[1]{0}', space=sflag, size = 0x4, scoped, tag = 'scoped memory for tpu_custom_call.1']
    #allocation7 [shape = 'u8[65536]{0}', space=vmem, size = 0x10000, scoped, tag = 'output window, operand 0']
    %9 = vsyncpa [#allocation3], 0
    %s10 = scalar_lea.sflag [#allocation3], 1
    %11 = vsyncpa %s10, 0
    %12 = vsyncpa [#allocation6], 0
    %13 = vsyncpa [#allocation4], 0
    %s14 = scalar_lea.sflag [#allocation4], 1
    %15 = vsyncpa %s14, 0
    loop: start=0, step=1, limit=4
    $region2: #{tpu_custom_call.1} parent=1 // loop_pre_header
      _
    $region3: #{tpu_custom_call.1} parent=1 // loop_header
      %s17 = sphi 0, %s21
      %p18 = scmp.ge.s32.totalorder %s17, 4
      %s27 = sphi 0, %s29
      %s30 = sphi 0, %s27
      %s31 = sphi 0, %s30
      %s47 = sphi 0, %s31
      %s51 = sphi 0, %s51
      %s53 = sphi 0, %s51
      %s54 = sphi 0, %s53
      %s68 = sphi 0, %s54
      %s72 = sphi 0, %s72
      %s74 = sphi 0, %s72
      %s75 = sphi 0, %s74
      %s89 = sphi 0, %s75
      %s93 = sphi 0, %s93
      %s95 = sphi 0, %s93
      %s96 = sphi 0, %s95
      %s110 = sphi 0, %s96
      %s116 = sphi 0, %s118
      %s119 = sphi 0, %s116
      %s120 = sphi 0, %s119
      %s136 = sphi 0, %s120
    $region4: #{tpu_custom_call.1} parent=1 // loop_header_branch
      %20 = sbr.rel (%p18) target = $region8
    $region5: #{tpu_custom_call.1} parent=1 // loop_body
      %s22 = ssub.s32 %s17, 1
      %s23 = ssub.s32 %s17, 2
      %s24 = sadd.s32 %s17, 1
      %s25 = ssub.s32 %s17, %s24
      %p26 = scmp.eq.s32.totalorder %s25, 0
      %s28 = sadd.s32 %s27, 1
      %s29 = scalar_select %p26, %s27, %s28
      %p32 = pneg %p26
      %p33 = scmp.eq.s32.totalorder %s17, 1
      %p34 = por %p32, %p33
      %p35 = scmp.ne.s32.totalorder %s27, %s30
      %p36 = scmp.eq.s32.totalorder %s17, 0
      %p37 = por %p35, %p36
      %p38 = scmp.ne.s32.totalorder %s27, %s30
      %p39 = scmp.eq.s32.totalorder %s22, 1
      %p40 = por %p38, %p39
      %p41 = scmp.ne.s32.totalorder %s30, %s31
      %p42 = scmp.eq.s32.totalorder %s22, 0
      %p43 = por %p41, %p42
      %p44 = scmp.ne.s32.totalorder %s30, %s31
      %p45 = scmp.eq.s32.totalorder %s23, 1
      %p46 = por %p44, %p45
      %p48 = scmp.ne.s32.totalorder %s31, %s47
      %p49 = scmp.eq.s32.totalorder %s23, 0
      %p50 = por %p48, %p49
      %s52 = sadd.s32 %s51, 1
      %p55 = scmp.eq.s32.totalorder %s17, 1
      %p56 = scmp.ne.s32.totalorder %s51, %s53
      %p57 = scmp.eq.s32.totalorder %s17, 0
      %p58 = por %p56, %p57
      %p59 = scmp.ne.s32.totalorder %s51, %s53
      %p60 = scmp.eq.s32.totalorder %s22, 1
      %p61 = por %p59, %p60
      %p62 = scmp.ne.s32.totalorder %s53, %s54
      %p63 = scmp.eq.s32.totalorder %s22, 0
      %p64 = por %p62, %p63
      %p65 = scmp.ne.s32.totalorder %s53, %s54
      %p66 = scmp.eq.s32.totalorder %s23, 1
      %p67 = por %p65, %p66
      %p69 = scmp.ne.s32.totalorder %s54, %s68
      %p70 = scmp.eq.s32.totalorder %s23, 0
      %p71 = por %p69, %p70
      %s73 = sadd.s32 %s72, 1
      %p76 = scmp.eq.s32.totalorder %s17, 1
      %p77 = scmp.ne.s32.totalorder %s72, %s74
      %p78 = scmp.eq.s32.totalorder %s17, 0
      %p79 = por %p77, %p78
      %p80 = scmp.ne.s32.totalorder %s72, %s74
      %p81 = scmp.eq.s32.totalorder %s22, 1
      %p82 = por %p80, %p81
      %p83 = scmp.ne.s32.totalorder %s74, %s75
      %p84 = scmp.eq.s32.totalorder %s22, 0
      %p85 = por %p83, %p84
      %p86 = scmp.ne.s32.totalorder %s74, %s75
      %p87 = scmp.eq.s32.totalorder %s23, 1
      %p88 = por %p86, %p87
      %p90 = scmp.ne.s32.totalorder %s75, %s89
      %p91 = scmp.eq.s32.totalorder %s23, 0
      %p92 = por %p90, %p91
      %s94 = sadd.s32 %s93, 1
      %p97 = scmp.eq.s32.totalorder %s17, 1
      %p98 = scmp.ne.s32.totalorder %s93, %s95
      %p99 = scmp.eq.s32.totalorder %s17, 0
      %p100 = por %p98, %p99
      %p101 = scmp.ne.s32.totalorder %s93, %s95
      %p102 = scmp.eq.s32.totalorder %s22, 1
      %p103 = por %p101, %p102
      %p104 = scmp.ne.s32.totalorder %s95, %s96
      %p105 = scmp.eq.s32.totalorder %s22, 0
      %p106 = por %p104, %p105
      %p107 = scmp.ne.s32.totalorder %s95, %s96
      %p108 = scmp.eq.s32.totalorder %s23, 1
      %p109 = por %p107, %p108
      %p111 = scmp.ne.s32.totalorder %s96, %s110
      %p112 = scmp.eq.s32.totalorder %s23, 0
      %p113 = por %p111, %p112
      %s114 = ssub.s32 %s17, %s24
      %p115 = scmp.eq.s32.totalorder %s114, 0
      %s117 = sadd.s32 %s116, 1
      %s118 = scalar_select %p115, %s116, %s117
      %p121 = pneg %p115
      %p122 = scmp.eq.s32.totalorder %s17, 1
      %p123 = por %p121, %p122
      %p124 = scmp.ne.s32.totalorder %s116, %s119
      %p125 = scmp.eq.s32.totalorder %s17, 0
      %p126 = por %p124, %p125
      %p127 = scmp.ne.s32.totalorder %s116, %s119
      %p128 = scmp.eq.s32.totalorder %s22, 1
      %p129 = por %p127, %p128
      %p130 = scmp.ne.s32.totalorder %s119, %s120
      %p131 = scmp.eq.s32.totalorder %s22, 0
      %p132 = por %p130, %p131
      %p133 = scmp.ne.s32.totalorder %s119, %s120
      %p134 = scmp.eq.s32.totalorder %s23, 1
      %p135 = por %p133, %p134
      %p137 = scmp.ne.s32.totalorder %s120, %s136
      %p138 = scmp.eq.s32.totalorder %s23, 0
      %p139 = por %p137, %p138
      %p140 = scmp.le.s32.totalorder 1, %s17
      %p141 = scmp.lt.s32.totalorder %s17, 3
      %p142 = pnand %p140, %p141
      %p143 = pneg %p142
      // Predicated region
      $region9: #{tpu_custom_call.1} parent=5 // pred_check
        _
      $region10: #{tpu_custom_call.1} parent=5 // pred_check_branch
        %145 = sbr.rel (%p142) target = $region12
      $region11: #{tpu_custom_call.1} parent=5 // pred_region
        %s146 = ssub.s32 %s17, 1
        // Predicated region
        $region13: #{tpu_custom_call.1} parent=11 // pred_check
          %p147 = pneg %p64
        $region14: #{tpu_custom_call.1} parent=11 // pred_check_branch
          %149 = sbr.rel (%p147) target = $region16
        $region15: #{tpu_custom_call.1} parent=11 // pred_region
          _
        $region16: #{tpu_custom_call.1} parent=11 // pred_fallthru
          _
        // Predicated region
        $region17: #{tpu_custom_call.1} parent=11 // pred_check
          %p150 = pneg %p85
        $region18: #{tpu_custom_call.1} parent=11 // pred_check_branch
          %152 = sbr.rel (%p150) target = $region20
        $region19: #{tpu_custom_call.1} parent=11 // pred_region
          _
        $region20: #{tpu_custom_call.1} parent=11 // pred_fallthru
          _
        // Predicated region
        $region21: #{tpu_custom_call.1} parent=11 // pred_check
          %p153 = pneg %p106
        $region22: #{tpu_custom_call.1} parent=11 // pred_check_branch
          %155 = sbr.rel (%p153) target = $region24
        $region23: #{tpu_custom_call.1} parent=11 // pred_region
          %s157 = ssub.s32 4096, 4096
          %158 = vsyncadd [#allocation6], %s157
          %s159 = sshll.u32 [#allocation5], 4
          %s160 = int_to_ptr.vmem [resolvable:$true] %s159
          %165 = dma.hbm_to_vmem [thread:$0]  %s3, 4096, %s160, [#allocation6], 128, 128, 8
        $region24: #{tpu_custom_call.1} parent=11 // pred_fallthru
          _
      $region12: #{tpu_custom_call.1} parent=5 // pred_fallthru
        _
      %p166 = scmp.lt.s32.totalorder %s17, 2
      // Predicated region
      $region25: #{tpu_custom_call.1} parent=5 // pred_check
        %p167 = pneg %p166
      $region26: #{tpu_custom_call.1} parent=5 // pred_check_branch
        %169 = sbr.rel (%p167) target = $region28
      $region27: #{tpu_custom_call.1} parent=5 // pred_region
        // Predicated region
        $region29: #{tpu_custom_call.1} parent=27 // pred_check
          %p170 = pneg %p37
        $region30: #{tpu_custom_call.1} parent=27 // pred_check_branch
          %172 = sbr.rel (%p170) target = $region32
        $region31: #{tpu_custom_call.1} parent=27 // pred_region
          %s173 = sand.u32 %s27, 1
          %s174 = scalar_lea.sflag [#allocation3], %s173
          %s175 = sand.u32 %s27, 1
          %s176 = smul.addr %s175, 128
          %s177 = scalar_lea.vmem [#allocation2], %s176
          %s178 = smul.u32 8, %s17
          %s180 = ssub.s32 2048, 2048
          %181 = vsyncadd %s174, %s180
          %s182 = smul.addr %s178, 2
          %s183 = smul.addr %s182, 128
          %s184 = scalar_lea.hbm %s0, %s183
          %s185 = sshll.u32 %s177, 4
          %s186 = int_to_ptr.vmem [resolvable:$true] %s185
          %191 = dma.hbm_to_vmem [thread:$0]  %s184, 2048, %s186, %s174, 256, 256, 16
        $region32: #{tpu_custom_call.1} parent=27 // pred_fallthru
          _
      $region28: #{tpu_custom_call.1} parent=5 // pred_fallthru
        _
      %p192 = scmp.le.s32.totalorder 1, %s17
      %p193 = scmp.lt.s32.totalorder %s17, 3
      %p194 = pnand %p192, %p193
      %p195 = pneg %p194
      // Predicated region
      $region33: #{tpu_custom_call.1} parent=5 // pred_check
        _
      $region34: #{tpu_custom_call.1} parent=5 // pred_check_branch
        %197 = sbr.rel (%p194) target = $region36
      $region35: #{tpu_custom_call.1} parent=5 // pred_region
        %s198 = ssub.s32 %s17, 1
        %s199 = sand.u32 %s30, 1
        %s200 = scalar_lea.sflag [#allocation3], %s199
        %s201 = sand.u32 %s30, 1
        %s202 = smul.addr %s201, 128
        %s203 = scalar_lea.vmem [#allocation2], %s202
        // Predicated region
        $region37: #{tpu_custom_call.1} parent=35 // pred_check
          %p204 = pneg %p43
        $region38: #{tpu_custom_call.1} parent=35 // pred_check_branch
          %206 = sbr.rel (%p204) target = $region40
        $region39: #{tpu_custom_call.1} parent=35 // pred_region
          %207 = dma.done %s200, 2048
        $region40: #{tpu_custom_call.1} parent=35 // pred_fallthru
          _
        // Predicated region
        $region41: #{tpu_custom_call.1} parent=35 // pred_check
          %p208 = pneg %p106
        $region42: #{tpu_custom_call.1} parent=35 // pred_check_branch
          %210 = sbr.rel (%p208) target = $region44
        $region43: #{tpu_custom_call.1} parent=35 // pred_region
          %211 = dma.done [#allocation6], 4096
        $region44: #{tpu_custom_call.1} parent=35 // pred_fallthru
          _
        %s212 = sand.u32 %s30, 1
        %s213 = scalar_lea.sflag [#allocation3], %s212
        %s214 = sand.u32 %s30, 1
        %s215 = smul.addr %s214, 128
        %s216 = scalar_lea.vmem [#allocation2], %s215
        %p217 = pneg %p43
        %p218 = pneg %p40
        %p219 = pneg %p64
        %p220 = pneg %p61
        %p221 = pneg %p85
        %p222 = pneg %p82
        %p223 = pneg %p106
        %p224 = pneg %p103
        %p225 = pneg %p132
        %p226 = pneg %p129
        %s227 = sand.u32 %s119, 1
        %s228 = scalar_lea.sflag [#allocation4], %s227
        %s229 = sand.u32 %s119, 1
        %s230 = smul.addr %s229, 64
        %s231 = scalar_lea.vmem [#allocation7], %s230
        %s232 = smul.u32 8, %s22
        %s233 = smul.u32 8, %s22
        %v234 = vld [vmem:[%s203] sm:$0xff]
        %v235 = vld [vmem:[%s203 + $0x8] sm:$0xff]
        %v236 = vld [vmem:[%s203 + $0x10] sm:$0xff]
        %v237 = vld [vmem:[%s203 + $0x18] sm:$0xff]
        %v238 = vld [vmem:[%s203 + $0x20] sm:$0xff]
        %v239 = vld [vmem:[%s203 + $0x28] sm:$0xff]
        %v240 = vld [vmem:[%s203 + $0x30] sm:$0xff]
        %v241 = vld [vmem:[%s203 + $0x38] sm:$0xff]
        %v242 = vld [vmem:[%s203 + $0x40] sm:$0xff]
        %v243 = vld [vmem:[%s203 + $0x48] sm:$0xff]
        %v244 = vld [vmem:[%s203 + $0x50] sm:$0xff]
        %v245 = vld [vmem:[%s203 + $0x58] sm:$0xff]
        %v246 = vld [vmem:[%s203 + $0x60] sm:$0xff]
        %v247 = vld [vmem:[%s203 + $0x68] sm:$0xff]
        %v248 = vld [vmem:[%s203 + $0x70] sm:$0xff]
        %v249 = vld [vmem:[%s203 + $0x78] sm:$0xff]
        %v250 = vadd.f32 %v234, %v235
        %251 = vadd.xlane.f32.xlu0 %v250
        %v252 = vpop.xlane.xlu0 %251
        %v253 = vadd.f32 %v236, %v237
        %254 = vadd.xlane.f32.xlu0 %v253
        %v255 = vpop.xlane.xlu0 %254
        %v256 = vadd.f32 %v238, %v239
        %257 = vadd.xlane.f32.xlu0 %v256
        %v258 = vpop.xlane.xlu0 %257
        %v259 = vadd.f32 %v240, %v241
        %260 = vadd.xlane.f32.xlu0 %v259
        %v261 = vpop.xlane.xlu0 %260
        %v262 = vadd.f32 %v242, %v243
        %263 = vadd.xlane.f32.xlu0 %v262
        %v264 = vpop.xlane.xlu0 %263
        %v265 = vadd.f32 %v244, %v245
        %266 = vadd.xlane.f32.xlu0 %v265
        %v267 = vpop.xlane.xlu0 %266
        %v268 = vadd.f32 %v246, %v247
        %269 = vadd.xlane.f32.xlu0 %v268
        %v270 = vpop.xlane.xlu0 %269
        %v271 = vadd.f32 %v248, %v249
        %272 = vadd.xlane.f32.xlu0 %v271
        %v273 = vpop.xlane.xlu0 %272
        %v274 = vrcp.pop 256.0
        %v275 = vmul.f32 %v252, %v274
        %v276 = vmul.f32 %v255, %v274
        %v277 = vmul.f32 %v258, %v274
        %v278 = vmul.f32 %v261, %v274
        %v279 = vmul.f32 %v264, %v274
        %v280 = vmul.f32 %v267, %v274
        %v281 = vmul.f32 %v270, %v274
        %v282 = vmul.f32 %v273, %v274
        %v283 = vsub.f32 %v234, %v275
        %v284 = vsub.f32 %v235, %v275
        %v285 = vsub.f32 %v236, %v276
        %v286 = vsub.f32 %v237, %v276
        %v287 = vsub.f32 %v238, %v277
        %v288 = vsub.f32 %v239, %v277
        %v289 = vsub.f32 %v240, %v278
        %v290 = vsub.f32 %v241, %v278
        %v291 = vsub.f32 %v242, %v279
        %v292 = vsub.f32 %v243, %v279
        %v293 = vsub.f32 %v244, %v280
        %v294 = vsub.f32 %v245, %v280
        %v295 = vsub.f32 %v246, %v281
        %v296 = vsub.f32 %v247, %v281
        %v297 = vsub.f32 %v248, %v282
        %v298 = vsub.f32 %v249, %v282
        %v299 = vmul.f32 %v283, %v283
        %v300 = vmul.f32 %v284, %v284
        %v301 = vmul.f32 %v285, %v285
        %v302 = vmul.f32 %v286, %v286
        %v303 = vmul.f32 %v287, %v287
        %v304 = vmul.f32 %v288, %v288
        %v305 = vmul.f32 %v289, %v289
        %v306 = vmul.f32 %v290, %v290
        %v307 = vmul.f32 %v291, %v291
        %v308 = vmul.f32 %v292, %v292
        %v309 = vmul.f32 %v293, %v293
        %v310 = vmul.f32 %v294, %v294
        %v311 = vmul.f32 %v295, %v295
        %v312 = vmul.f32 %v296, %v296
        %v313 = vmul.f32 %v297, %v297
        %v314 = vmul.f32 %v298, %v298
        %v315 = vadd.f32 %v299, %v300
        %316 = vadd.xlane.f32.xlu0 %v315
        %v317 = vpop.xlane.xlu0 %316
        %v318 = vadd.f32 %v301, %v302
        %319 = vadd.xlane.f32.xlu0 %v318
        %v320 = vpop.xlane.xlu0 %319
        %v321 = vadd.f32 %v303, %v304
        %322 = vadd.xlane.f32.xlu0 %v321
        %v323 = vpop.xlane.xlu0 %322
        %v324 = vadd.f32 %v305, %v306
        %325 = vadd.xlane.f32.xlu0 %v324
        %v326 = vpop.xlane.xlu0 %325
        %v327 = vadd.f32 %v307, %v308
        %328 = vadd.xlane.f32.xlu0 %v327
        %v329 = vpop.xlane.xlu0 %328
        %v330 = vadd.f32 %v309, %v310
        %331 = vadd.xlane.f32.xlu0 %v330
        %v332 = vpop.xlane.xlu0 %331
        %v333 = vadd.f32 %v311, %v312
        %334 = vadd.xlane.f32.xlu0 %v333
        %v335 = vpop.xlane.xlu0 %334
        %v336 = vadd.f32 %v313, %v314
        %337 = vadd.xlane.f32.xlu0 %v336
        %v338 = vpop.xlane.xlu0 %337
        %v339 = vmul.f32 %v317, %v274
        %v340 = vmul.f32 %v320, %v274
        %v341 = vmul.f32 %v323, %v274
        %v342 = vmul.f32 %v326, %v274
        %v343 = vmul.f32 %v329, %v274
        %v344 = vmul.f32 %v332, %v274
        %v345 = vmul.f32 %v335, %v274
        %v346 = vmul.f32 %v338, %v274
        %v347 = vadd.f32 %v339, 1e-05
        %v348 = vadd.f32 %v340, 1e-05
        %v349 = vadd.f32 %v341, 1e-05
        %v350 = vadd.f32 %v342, 1e-05
        %v351 = vadd.f32 %v343, 1e-05
        %v352 = vadd.f32 %v344, 1e-05
        %v353 = vadd.f32 %v345, 1e-05
        %v354 = vadd.f32 %v346, 1e-05
        %v355 = vrsqrt.pop %v347
        %v356 = vrsqrt.pop %v348
        %v357 = vrsqrt.pop %v349
        %v358 = vrsqrt.pop %v350
        %v359 = vrsqrt.pop %v351
        %v360 = vrsqrt.pop %v352
        %v361 = vrsqrt.pop %v353
        %v362 = vrsqrt.pop %v354
        %v363 = vmul.f32 %v283, %v355
        %v364 = vmul.f32 %v284, %v355
        %v365 = vmul.f32 %v285, %v356
        %v366 = vmul.f32 %v286, %v356
        %v367 = vmul.f32 %v287, %v357
        %v368 = vmul.f32 %v288, %v357
        %v369 = vmul.f32 %v289, %v358
        %v370 = vmul.f32 %v290, %v358
        %v371 = vmul.f32 %v291, %v359
        %v372 = vmul.f32 %v292, %v359
        %v373 = vmul.f32 %v293, %v360
        %v374 = vmul.f32 %v294, %v360
        %v375 = vmul.f32 %v295, %v361
        %v376 = vmul.f32 %v296, %v361
        %v377 = vmul.f32 %v297, %v362
        %v378 = vmul.f32 %v298, %v362
        %v379 = vld [vmem:[%s1] sm:$0x3]
        %v381 = vlaneseq
        %v382 = vshrl.u32 %v381, 7
        %v383 = vsub.s32 0, %v382
        %v384 = vrot.slane %v379, %v383
        %v385 = vlaneseq
        %v386 = vshrl.u32 %v385, 7
        %v387 = vsub.s32 1, %v386
        %v388 = vrot.slane %v379, %v387
        %v391 = vmul.f32 %v363, %v384
        %v392 = vmul.f32 %v364, %v388
        %v393 = vmul.f32 %v365, %v384
        %v394 = vmul.f32 %v366, %v388
        %v395 = vmul.f32 %v367, %v384
        %v396 = vmul.f32 %v368, %v388
        %v397 = vmul.f32 %v369, %v384
        %v398 = vmul.f32 %v370, %v388
        %v399 = vmul.f32 %v371, %v384
        %v400 = vmul.f32 %v372, %v388
        %v401 = vmul.f32 %v373, %v384
        %v402 = vmul.f32 %v374, %v388
        %v403 = vmul.f32 %v375, %v384
        %v404 = vmul.f32 %v376, %v388
        %v405 = vmul.f32 %v377, %v384
        %v406 = vmul.f32 %v378, %v388
        %v407 = vld [vmem:[%s2] sm:$0x3]
        %v409 = vlaneseq
        %v410 = vshrl.u32 %v409, 7
        %v411 = vsub.s32 0, %v410
        %v412 = vrot.slane %v407, %v411
        %v413 = vlaneseq
        %v414 = vshrl.u32 %v413, 7
        %v415 = vsub.s32 1, %v414
        %v416 = vrot.slane %v407, %v415
        %v419 = vadd.f32 %v391, %v412
        %v420 = vadd.f32 %v392, %v416
        %v421 = vadd.f32 %v393, %v412
        %v422 = vadd.f32 %v394, %v416
        %v423 = vadd.f32 %v395, %v412
        %v424 = vadd.f32 %v396, %v416
        %v425 = vadd.f32 %v397, %v412
        %v426 = vadd.f32 %v398, %v416
        %v427 = vadd.f32 %v399, %v412
        %v428 = vadd.f32 %v400, %v416
        %v429 = vadd.f32 %v401, %v412
        %v430 = vadd.f32 %v402, %v416
        %v431 = vadd.f32 %v403, %v412
        %v432 = vadd.f32 %v404, %v416
        %v433 = vadd.f32 %v405, %v412
        %v434 = vadd.f32 %v406, %v416
        %v435 = vld [vmem:[#allocation5] sm:$0xff]
        %v436 = vld [vmem:[#allocation5 + $0x8] sm:$0xff]
        %v437 = vld [vmem:[#allocation5 + $0x10] sm:$0xff]
        %v438 = vld [vmem:[#allocation5 + $0x18] sm:$0xff]
        %v439 = vld [vmem:[#allocation5 + $0x20] sm:$0xff]
        %v440 = vld [vmem:[#allocation5 + $0x28] sm:$0xff]
        %v441 = vld [vmem:[#allocation5 + $0x30] sm:$0xff]
        %v442 = vld [vmem:[#allocation5 + $0x38] sm:$0xff]
        %v443 = vld [vmem:[#allocation5 + $0x40] sm:$0xff]
        %v444 = vld [vmem:[#allocation5 + $0x48] sm:$0xff]
        %v445 = vld [vmem:[#allocation5 + $0x50] sm:$0xff]
        %v446 = vld [vmem:[#allocation5 + $0x58] sm:$0xff]
        %v447 = vld [vmem:[#allocation5 + $0x60] sm:$0xff]
        %v448 = vld [vmem:[#allocation5 + $0x68] sm:$0xff]
        %v449 = vld [vmem:[#allocation5 + $0x70] sm:$0xff]
        %v450 = vld [vmem:[#allocation5 + $0x78] sm:$0xff]
        %v451 = vld [vmem:[#allocation5 + $0x80] sm:$0xff]
        %v452 = vld [vmem:[#allocation5 + $0x88] sm:$0xff]
        %v453 = vld [vmem:[#allocation5 + $0x90] sm:$0xff]
        %v454 = vld [vmem:[#allocation5 + $0x98] sm:$0xff]
        %v455 = vld [vmem:[#allocation5 + $0xa0] sm:$0xff]
        %v456 = vld [vmem:[#allocation5 + $0xa8] sm:$0xff]
        %v457 = vld [vmem:[#allocation5 + $0xb0] sm:$0xff]
        %v458 = vld [vmem:[#allocation5 + $0xb8] sm:$0xff]
        %v459 = vld [vmem:[#allocation5 + $0xc0] sm:$0xff]
        %v460 = vld [vmem:[#allocation5 + $0xc8] sm:$0xff]
        %v461 = vld [vmem:[#allocation5 + $0xd0] sm:$0xff]
        %v462 = vld [vmem:[#allocation5 + $0xd8] sm:$0xff]
        %v463 = vld [vmem:[#allocation5 + $0xe0] sm:$0xff]
        %v464 = vld [vmem:[#allocation5 + $0xe8] sm:$0xff]
        %v465 = vld [vmem:[#allocation5 + $0xf0] sm:$0xff]
        %v466 = vld [vmem:[#allocation5 + $0xf8] sm:$0xff]
        %467 = vmatprep.subr.mxu0 0.0
        %468 = vmatpush1.msra.mxu0 %v435
        %469 = vmatprep.subr.mxu0 0.0
        %470 = vmatpush1.msra.mxu0 %v436
        %471 = vmatprep.subr.mxu0 0.0
        %472 = vmatpush1.msra.mxu0 %v437
        %473 = vmatprep.subr.mxu0 0.0
        %474 = vmatpush1.msra.mxu0 %v438
        %475 = vmatprep.subr.mxu0 0.0
        %476 = vmatpush1.msra.mxu0 %v439
        %477 = vmatprep.subr.mxu0 0.0
        %478 = vmatpush1.msra.mxu0 %v440
        %479 = vmatprep.subr.mxu0 0.0
        %480 = vmatpush1.msra.mxu0 %v441
        %481 = vmatprep.subr.mxu0 0.0
        %482 = vmatpush1.msra.mxu0 %v442
        %483 = vmatprep.subr.mxu0 0.0
        %484 = vmatpush1.msra.mxu0 %v443
        %485 = vmatprep.subr.mxu0 0.0
        %486 = vmatpush1.msra.mxu0 %v444
        %487 = vmatprep.subr.mxu0 0.0
        %488 = vmatpush1.msra.mxu0 %v445
        %489 = vmatprep.subr.mxu0 0.0
        %490 = vmatpush1.msra.mxu0 %v446
        %491 = vmatprep.subr.mxu0 0.0
        %492 = vmatpush1.msra.mxu0 %v447
        %493 = vmatprep.subr.mxu0 0.0
        %494 = vmatpush1.msra.mxu0 %v448
        %495 = vmatprep.subr.mxu0 0.0
        %496 = vmatpush1.msra.mxu0 %v449
        %497 = vmatprep.subr.mxu0 0.0
        %498 = vmatpush1.msra.mxu0 %v450
        %499 = vmatprep.subr.mxu0 0.0
        %500 = vmatpush1.msra.mxu0 %v451
        %501 = vmatprep.subr.mxu0 0.0
        %502 = vmatpush1.msra.mxu0 %v452
        %503 = vmatprep.subr.mxu0 0.0
        %504 = vmatpush1.msra.mxu0 %v453
        %505 = vmatprep.subr.mxu0 0.0
        %506 = vmatpush1.msra.mxu0 %v454
        %507 = vmatprep.subr.mxu0 0.0
        %508 = vmatpush1.msra.mxu0 %v455
        %509 = vmatprep.subr.mxu0 0.0
        %510 = vmatpush1.msra.mxu0 %v456
        %511 = vmatprep.subr.mxu0 0.0
        %512 = vmatpush1.msra.mxu0 %v457
        %513 = vmatprep.subr.mxu0 0.0
        %514 = vmatpush1.msra.mxu0 %v458
        %515 = vmatprep.subr.mxu0 0.0
        %516 = vmatpush1.msra.mxu0 %v459
        %517 = vmatprep.subr.mxu0 0.0
        %518 = vmatpush1.msra.mxu0 %v460
        %519 = vmatprep.subr.mxu0 0.0
        %520 = vmatpush1.msra.mxu0 %v461
        %521 = vmatprep.subr.mxu0 0.0
        %522 = vmatpush1.msra.mxu0 %v462
        %523 = vmatprep.subr.mxu0 0.0
        %524 = vmatpush1.msra.mxu0 %v463
        %525 = vmatprep.subr.mxu0 0.0
        %526 = vmatpush1.msra.mxu0 %v464
        %527 = vmatprep.subr.mxu0 0.0
        %528 = vmatpush1.msra.mxu0 %v465
        %529 = vmatprep.subr.mxu0 0.0
        %530 = vmatpush1.msra.mxu0 %v466
        %531 = vmatprep.mubr.f32.mxu0 %v420
        %532 = vmatmul.mubr.f32.gmra.mrb[0].mxu0 %v419
        %v533 = vpop.f32.mrb[0].mxu0
        %v534 = vadd.f32 0.0, %v533
        %v535 = vpop.f32.mrb[0].mxu0
        %536 = vmatprep.mubr.f32.mxu0 %v422
        %537 = vmatmul.mubr.f32.gmra.mrb[0].mxu0 %v421
        %v538 = vpop.f32.mrb[0].mxu0
        %v539 = vadd.f32 0.0, %v538
        %v540 = vpop.f32.mrb[0].mxu0
        %541 = vmatprep.mubr.f32.mxu0 %v424
        %542 = vmatmul.mubr.f32.gmra.mrb[0].mxu0 %v423
        %v543 = vpop.f32.mrb[0].mxu0
        %v544 = vadd.f32 0.0, %v543
        %v545 = vpop.f32.mrb[0].mxu0
        %546 = vmatprep.mubr.f32.mxu0 %v426
        %547 = vmatmul.mubr.f32.gmra.mrb[0].mxu0 %v425
        %v548 = vpop.f32.mrb[0].mxu0
        %v549 = vadd.f32 0.0, %v548
        %v550 = vpop.f32.mrb[0].mxu0
        %551 = vmatprep.mubr.f32.mxu0 %v428
        %552 = vmatmul.mubr.f32.gmra.mrb[0].mxu0 %v427
        %v553 = vpop.f32.mrb[0].mxu0
        %v554 = vadd.f32 0.0, %v553
        %v555 = vpop.f32.mrb[0].mxu0
        %556 = vmatprep.mubr.f32.mxu0 %v430
        %557 = vmatmul.mubr.f32.gmra.mrb[0].mxu0 %v429
        %v558 = vpop.f32.mrb[0].mxu0
        %v559 = vadd.f32 0.0, %v558
        %v560 = vpop.f32.mrb[0].mxu0
        %561 = vmatprep.mubr.f32.mxu0 %v432
        %562 = vmatmul.mubr.f32.gmra.mrb[0].mxu0 %v431
        %v563 = vpop.f32.mrb[0].mxu0
        %v564 = vadd.f32 0.0, %v563
        %v565 = vpop.f32.mrb[0].mxu0
        %566 = vmatprep.mubr.f32.mxu0 %v434
        %567 = vmatmul.mubr.f32.gmra.mrb[0].mxu0 %v433
        %v568 = vpop.f32.mrb[0].mxu0
        %v569 = vadd.f32 0.0, %v568
        %v570 = vpop.f32.mrb[0].mxu0
        %571 = vdwg.mxu0
        %572 = vst [vmem:[%s231] sm:$0xff] %v534
        %573 = vst [vmem:[%s231 + $0x8] sm:$0xff] %v539
        %574 = vst [vmem:[%s231 + $0x10] sm:$0xff] %v544
        %575 = vst [vmem:[%s231 + $0x18] sm:$0xff] %v549
        %576 = vst [vmem:[%s231 + $0x20] sm:$0xff] %v554
        %577 = vst [vmem:[%s231 + $0x28] sm:$0xff] %v559
        %578 = vst [vmem:[%s231 + $0x30] sm:$0xff] %v564
        %579 = vst [vmem:[%s231 + $0x38] sm:$0xff] %v569
        %s580 = sand.u32 %s119, 1
        %s581 = scalar_lea.sflag [#allocation4], %s580
        %s582 = sand.u32 %s119, 1
        %s583 = smul.addr %s582, 64
        %s584 = scalar_lea.vmem [#allocation7], %s583
        // Predicated region
        $region45: #{tpu_custom_call.1} parent=35 // pred_check
          %p585 = pneg %p129
        $region46: #{tpu_custom_call.1} parent=35 // pred_check_branch
          %587 = sbr.rel (%p585) target = $region48
        $region47: #{tpu_custom_call.1} parent=35 // pred_region
          %s588 = smul.u32 8, %s22
          %s590 = ssub.s32 1024, 1024
          %591 = vsyncadd %s581, %s590
          %s592 = smul.addr %s588, 128
          %s593 = scalar_lea.hbm %s4, %s592
          %s594 = sshll.u32 %s584, 4
          %s595 = int_to_ptr.vmem [resolvable:$true] %s594
          %600 = dma.vmem_to_hbm [thread:$0]  %s595, 1024, %s593, %s581, 128, 128, 8
        $region48: #{tpu_custom_call.1} parent=35 // pred_fallthru
          _
      $region36: #{tpu_custom_call.1} parent=5 // pred_fallthru
        _
      %p601 = scmp.le.s32.totalorder 2, %s17
      // Predicated region
      $region49: #{tpu_custom_call.1} parent=5 // pred_check
        %p602 = pneg %p601
      $region50: #{tpu_custom_call.1} parent=5 // pred_check_branch
        %604 = sbr.rel (%p602) target = $region52
      $region51: #{tpu_custom_call.1} parent=5 // pred_region
        %s605 = ssub.s32 %s17, 2
        // Predicated region
        $region53: #{tpu_custom_call.1} parent=51 // pred_check
          %p606 = pneg %p135
        $region54: #{tpu_custom_call.1} parent=51 // pred_check_branch
          %608 = sbr.rel (%p606) target = $region56
        $region55: #{tpu_custom_call.1} parent=51 // pred_region
          %s609 = sand.u32 %s120, 1
          %s610 = scalar_lea.sflag [#allocation4], %s609
          %s611 = sand.u32 %s120, 1
          %s612 = smul.addr %s611, 64
          %s613 = scalar_lea.vmem [#allocation7], %s612
          %614 = dma.done %s610, 1024
        $region56: #{tpu_custom_call.1} parent=51 // pred_fallthru
          _
      $region52: #{tpu_custom_call.1} parent=5 // pred_fallthru
        _
    $region6: #{tpu_custom_call.1} parent=1 // loop_footer
      %s21 = sadd.s32 1, %s17
    $region7: #{tpu_custom_call.1} parent=1 // loop_footer_branch
      %16 = sbr.rel target = $region3
    $region8: #{tpu_custom_call.1} parent=1 // loop_exit
      _
    %615 = vsyncpa [#allocation3], 1
    %s616 = scalar_lea.sflag [#allocation3], 1
    %617 = vsyncpa %s616, 1
    %618 = vsyncpa [#allocation6], 1
    %619 = vsyncpa [#allocation4], 1
    %s620 = scalar_lea.sflag [#allocation4], 1
    %621 = vsyncpa %s620, 1

</llo_original>
